<compile_context>
chip_gen: v6e
topology: v6e:2x2x1
jax: 0.10.0
libtpu: 0.0.40
codegen_flags: <defaults>
</compile_context>

<pallas_src>
import math

import jax
import jax.numpy as jnp
from jax import lax
from jax.experimental import pallas as pl
from jax.experimental.pallas import tpu as pltpu

_SQRT_HALF = 1.0 / math.sqrt(2.0)


def _round_up(x, m):
    return ((x + m - 1) // m) * m


def _gelu_exact_f32(x):
    # F.gelu default ("none" approximation): 0.5 * x * (1 + erf(x / sqrt(2))).
    return 0.5 * x * (1.0 + lax.erf(x * _SQRT_HALF))


# ----------------------------------------------------------------------------
# Kernels
# ----------------------------------------------------------------------------
def _mlp_resident_kernel(x_ref, wfc_ref, wproj_ref, o_ref):
    # x_ref:     (tm, C)  bf16 token tile
    # wfc_ref:   (C, H)   full c_fc weight (resident, contraction dim first)
    # wproj_ref: (H, C)   full c_proj weight (resident)
    # o_ref:     (tm, C)
    h = jnp.dot(x_ref[...], wfc_ref[...], preferred_element_type=jnp.float32)
    h = _gelu_exact_f32(h)
    y = jnp.dot(h.astype(wproj_ref.dtype), wproj_ref[...],
                preferred_element_type=jnp.float32)
    o_ref[...] = y.astype(o_ref.dtype)


def _mlp_reduce_kernel(x_ref, wfc_ref, wproj_ref, o_ref, acc_ref):
    # x_ref:     (tm, C)  bf16 token tile (revisited across k)
    # wfc_ref:   (C, th)  c_fc slice, contraction dim first
    # wproj_ref: (th, C)  c_proj slice, contraction dim first
    # o_ref:     (tm, C)  output tile (resident across the H grid axis)
    # acc_ref:   (tm, C)  f32 accumulator scratch
    k = pl.program_id(1)
    nk = pl.num_programs(1)

    @pl.when(k == 0)
    def _():
        acc_ref[...] = jnp.zeros_like(acc_ref)

    h = jnp.dot(x_ref[...], wfc_ref[...], preferred_element_type=jnp.float32)
    h = _gelu_exact_f32(h)
    y_part = jnp.dot(h.astype(wproj_ref.dtype), wproj_ref[...],
                     preferred_element_type=jnp.float32)

    @pl.when(k < nk - 1)
    def _():
        acc_ref[...] += y_part

    @pl.when(k == nk - 1)
    def _():
        # Fold the last partial into the final store (saves one RMW of acc).
        o_ref[...] = (acc_ref[...] + y_part).astype(o_ref.dtype)


# ----------------------------------------------------------------------------
# Tiling / budgeting helpers
# ----------------------------------------------------------------------------
def _device_kind():
    try:
        return jax.devices()[0].device_kind.lower()
    except Exception:
        return ""


def _default_tm(kind):
    # Arithmetic intensity = tm flops per streamed weight byte.
    if "v6" in kind:
        return 1024        # v6e needs ~700+ flops/byte
    if "v5" in kind:
        return 384         # v5e roofline ~240 flops/byte
    return 512             # v7x (~310 flops/byte) / unknown


def _vmem_capacity(kind):
    try:
        cap = getattr(pltpu.get_tpu_info(), "vmem_capacity_bytes", None)
        if cap:
            return int(cap)
    except Exception:
        pass
    return (64 << 20) if ("7" in kind) else (128 << 20)


def _resident_vmem_est(tm, C, H, out_bpe):
    return (2 * tm * C * 2          # x tiles (bf16, double-buffered)
            + 2 * 2 * C * H * 2     # both weights (budget 2 buffers each)
            + 2 * tm * C * out_bpe  # out tiles (double-buffered)
            + tm * H * 6            # GELU intermediate: f32 value + bf16 copy
            + (2 << 20))            # Mosaic internal scratch headroom


def _reduce_vmem_est(tm, th, C, out_bpe):
    return (2 * tm * C * 2          # x tiles
            + 2 * C * th * 2        # c_fc tiles
            + 2 * th * C * 2        # c_proj tiles
            + 2 * tm * C * out_bpe  # out tiles
            + tm * C * 4            # f32 accumulator scratch
            + tm * th * 6           # GELU intermediate: f32 value + bf16 copy
            + (2 << 20))


# ----------------------------------------------------------------------------
# Wrapper
# ----------------------------------------------------------------------------
def mlp_forward(x, w_fc, w_proj, *, tm=None, th=None,
                compute_dtype=jnp.bfloat16, force_reduction=False):
    """GPT-2 MLP forward: gelu(x @ w_fc^T) @ w_proj^T.

    x:      (B, T, C)
    w_fc:   (4C, C)   PyTorch nn.Linear (out, in) layout
    w_proj: (C, 4C)   PyTorch nn.Linear (out, in) layout
    """
    B, T, C = x.shape
    H = w_fc.shape[0]
    assert w_fc.shape == (H, C) and w_proj.shape == (C, H)
    assert C % 128 == 0, "n_embd must be a multiple of 128 for this kernel"
    assert H % 128 == 0

    out_dtype = x.dtype
    out_bpe = jnp.dtype(out_dtype).itemsize
    w_bpe = jnp.dtype(compute_dtype).itemsize

    kind = _device_kind()
    capacity = _vmem_capacity(kind)
    budget = int(0.8 * capacity)

    M = B * T
    M_pad128 = _round_up(M, 128)

    # ---- token tile ----
    tm_ = _round_up(tm if tm is not None else _default_tm(kind), 128)
    tm_ = min(tm_, M_pad128)

    # ---- path selection: weight-resident vs streamed reduction ----
    use_resident = (not force_reduction) and (
        _resident_vmem_est(tm_, C, H, out_bpe) <= budget)

    th_ = H
    if not use_resident:
        if th is not None:
            th_ = th
            assert th_ % 128 == 0 and H % th_ == 0
        else:
            th_ = H
            while th_ > 1024 and (th_ // 2) % 128 == 0 and H % (th_ // 2) == 0:
                th_ //= 2
        # Shrink tiles until the double-buffered working set fits VMEM.
        while _reduce_vmem_est(tm_, th_, C, out_bpe) > budget:
            if th_ > 128 and (th_ // 2) % 128 == 0 and H % (th_ // 2) == 0:
                th_ //= 2
            elif tm_ > 128:
                tm_ = max(128, (tm_ // 2) // 128 * 128)
            else:
                break

    # ---- avoid a large padded copy of x: snap tm to a divisor of M_pad128
    #      when one exists reasonably close to the target tile size ----
    if M_pad128 % tm_ != 0:
        cand = tm_
        while cand >= 128 and M_pad128 % cand != 0:
            cand -= 128
        if cand >= max(128, tm_ // 2):
            tm_ = cand
            M_pad = M_pad128
        else:
            M_pad = _round_up(M, tm_)
    else:
        M_pad = M_pad128

    # ---- operand prep (all layout work happens once, outside pallas_call) ----
    # x cast to bf16 in the wrapper: halves HBM read + VMEM tile.
    x2d = x.reshape(M, C).astype(compute_dtype)
    if M_pad != M:
        x2d = jnp.pad(x2d, ((0, M_pad - M), (0, 0)))
    # Transpose weights once (fused with the bf16 cast) so the contraction dim
    # is second-to-last inside the kernel -> no per-step XLU transposes.
    wfc_t = w_fc.T.astype(compute_dtype)      # (C, H)
    wproj_t = w_proj.T.astype(compute_dtype)  # (H, C)

    n_i = M_pad // tm_

    if use_resident:
        est = _resident_vmem_est(tm_, C, H, out_bpe)
        grid = (n_i,)
        in_specs = [
            pl.BlockSpec((tm_, C), lambda i: (i, 0)),
            pl.BlockSpec((C, H), lambda i: (0, 0)),   # resident: loaded once
            pl.BlockSpec((H, C), lambda i: (0, 0)),   # resident: loaded once
        ]
        out_specs = pl.BlockSpec((tm_, C), lambda i: (i, 0))
        scratch_shapes = []
        kernel = _mlp_resident_kernel
        dim_sem = ("parallel",)
        weight_reads = 1
    else:
        est = _reduce_vmem_est(tm_, th_, C, out_bpe)
        grid = (n_i, H // th_)
        in_specs = [
            pl.BlockSpec((tm_, C), lambda i, k: (i, 0)),
            pl.BlockSpec((C, th_), lambda i, k: (0, k)),
            pl.BlockSpec((th_, C), lambda i, k: (k, 0)),
        ]
        out_specs = pl.BlockSpec((tm_, C), lambda i, k: (i, 0))
        scratch_shapes = [pltpu.VMEM((tm_, C), jnp.float32)]
        kernel = _mlp_reduce_kernel
        dim_sem = ("parallel", "arbitrary")
        weight_reads = n_i   # weights are re-streamed once per token tile

    # Never exceed the chip's physical VMEM (v7x: 64 MiB).
    vmem_limit = min(int(est) + (8 << 20), int(0.9 * capacity))

    cost = pl.CostEstimate(
        flops=4 * M_pad * C * H,                       # two matmuls, 2*M*C*H each
        transcendentals=M_pad * H,                     # erf per hidden activation
        bytes_accessed=(M_pad * C * w_bpe              # read x (bf16)
                        + weight_reads * 2 * H * C * w_bpe   # weight (re-)reads
                        + M_pad * C * out_bpe),        # write y
    )

    out2d = pl.pallas_call(
        kernel,
        out_shape=jax.ShapeDtypeStruct((M_pad, C), out_dtype),
        grid_spec=pltpu.PrefetchScalarGridSpec(
            num_scalar_prefetch=0,
            grid=grid,
            in_specs=in_specs,
            out_specs=out_specs,
            scratch_shapes=scratch_shapes,
        ),
        compiler_params=pltpu.CompilerParams(
            dimension_semantics=dim_sem,
            vmem_limit_bytes=vmem_limit,
        ),
        cost_estimate=cost,
    )(x2d, wfc_t, wproj_t)

    if M_pad != M:
        out2d = out2d[:M]
    return out2d.reshape(B, T, C)


def mlp_reference(x, w_fc, w_proj, compute_dtype=jnp.float32):
    """Pure-JAX reference with the same dtype policy as the kernel."""
    xc = x.astype(compute_dtype)
    h = lax.dot_general(xc, w_fc.astype(compute_dtype),
                        (((2,), (1,)), ((), ())),
                        preferred_element_type=jnp.float32)
    h = _gelu_exact_f32(h)
    y = lax.dot_general(h.astype(compute_dtype), w_proj.astype(compute_dtype),
                        (((2,), (1,)), ((), ())),
                        preferred_element_type=jnp.float32)
    return y.astype(x.dtype)


if __name__ == "__main__":
    # Small GPT-2-like config, lane-dense: n_embd=128 -> hidden=512.
    B, T, C = 2, 64, 128
    H = 4 * C

    key = jax.random.PRNGKey(0)
    kx, kfc, kproj = jax.random.split(key, 3)

    x = jax.random.normal(kx, (B, T, C), dtype=jnp.float32)
    # nn.Linear-like init scale ~ 1/sqrt(fan_in), PyTorch (out, in) layout.
    w_fc = jax.random.normal(kfc, (H, C), dtype=jnp.float32) / math.sqrt(C)
    w_proj = jax.random.normal(kproj, (C, H), dtype=jnp.float32) / math.sqrt(H)

    y_bf16_ref = mlp_reference(x, w_fc, w_proj, compute_dtype=jnp.bfloat16)
    y_f32_ref = mlp_reference(x, w_fc, w_proj, compute_dtype=jnp.float32)

    # Path 1 (default): weight-resident — both weights fit in VMEM here.
    y = jax.block_until_ready(mlp_forward(x, w_fc, w_proj))
    assert y.shape == (B, T, C)
    assert jnp.allclose(y, y_bf16_ref, atol=2e-2, rtol=2e-2), \
        "resident path: mismatch vs bf16 reference"
    rel_err = jnp.max(jnp.abs(y - y_f32_ref)) / (jnp.max(jnp.abs(y_f32_ref)) + 1e-6)
    assert rel_err < 5e-2, f"resident path: rel err vs f32 reference {rel_err}"

    # Path 2 (forced): streamed-weight reduction path with 2 reduction steps.
    y2 = jax.block_until_ready(
        mlp_forward(x, w_fc, w_proj, force_reduction=True, th=256))
    assert y2.shape == (B, T, C)
    assert jnp.allclose(y2, y_bf16_ref, atol=2e-2, rtol=2e-2), \
        "reduction path: mismatch vs bf16 reference"

    print("KERNEL_OK")
</pallas_src>

<mosaic_0001>
module attributes {stable_mosaic.version = 11 : i64} {
  func.func @_mlp_resident_kernel(%arg0: i32, %arg1: memref<128x128xbf16, #tpu.memory_space<vmem>>, %arg2: memref<128x512xbf16, #tpu.memory_space<vmem>>, %arg3: memref<512x128xbf16, #tpu.memory_space<vmem>>, %arg4: memref<128x128xf32, #tpu.memory_space<vmem>>) attributes {dimension_semantics = [#tpu.dimension_semantics<parallel>], iteration_bounds = array<i64: 1>, scalar_prefetch = 0 : i64, scratch_operands = 0 : i64, tpu.core_type = #tpu.core_type<tc>, window_params = [{transform_indices = @transform_0, window_bounds = array<i64: 128, 128>}, {pipeline_mode = #tpu.pipeline_mode<synchronous>, transform_indices = @transform_1, window_bounds = array<i64: 128, 512>}, {pipeline_mode = #tpu.pipeline_mode<synchronous>, transform_indices = @transform_2, window_bounds = array<i64: 512, 128>}, {transform_indices = @transform_3, window_bounds = array<i64: 128, 128>}]} {
    %c0 = arith.constant 0 : index
    %c0_0 = arith.constant 0 : index
    %0 = vector.load %arg1[%c0, %c0_0] : memref<128x128xbf16, #tpu.memory_space<vmem>>, vector<128x128xbf16>
    %c0_1 = arith.constant 0 : index
    %c0_2 = arith.constant 0 : index
    %1 = vector.load %arg2[%c0_1, %c0_2] : memref<128x512xbf16, #tpu.memory_space<vmem>>, vector<128x512xbf16>
    %cst = arith.constant dense<0.000000e+00> : vector<128x512xf32>
    %2 = tpu.matmul %0, %1, %cst {dimension_numbers = #tpu.dot_dimension_numbers<[1], [0], [0], [1], [0, 0, 1, 1], [], []>} : vector<128x128xbf16>, vector<128x512xbf16>, vector<128x512xf32> -> vector<128x512xf32>
    %cst_3 = arith.constant 5.000000e-01 : f32
    %3 = vector.broadcast %cst_3 : f32 to vector<128x512xf32>
    %4 = arith.mulf %3, %2 : vector<128x512xf32>
    %cst_4 = arith.constant 0.707106769 : f32
    %5 = vector.broadcast %cst_4 : f32 to vector<128x512xf32>
    %6 = arith.mulf %2, %5 : vector<128x512xf32>
    %7 = math.erf %6 : vector<128x512xf32>
    %cst_5 = arith.constant 1.000000e+00 : f32
    %8 = vector.broadcast %cst_5 : f32 to vector<128x512xf32>
    %9 = arith.addf %8, %7 : vector<128x512xf32>
    %10 = arith.mulf %4, %9 : vector<128x512xf32>
    %11 = arith.truncf %10 : vector<128x512xf32> to vector<128x512xbf16>
    %c0_6 = arith.constant 0 : index
    %c0_7 = arith.constant 0 : index
    %12 = vector.load %arg3[%c0_6, %c0_7] : memref<512x128xbf16, #tpu.memory_space<vmem>>, vector<512x128xbf16>
    %cst_8 = arith.constant dense<0.000000e+00> : vector<128x128xf32>
    %13 = tpu.matmul %11, %12, %cst_8 {dimension_numbers = #tpu.dot_dimension_numbers<[1], [0], [0], [1], [0, 0, 1, 1], [], []>} : vector<128x512xbf16>, vector<512x128xbf16>, vector<128x128xf32> -> vector<128x128xf32>
    %c0_9 = arith.constant 0 : index
    %c0_10 = arith.constant 0 : index
    %14 = vector.load %arg4[%c0_9, %c0_10] : memref<128x128xf32, #tpu.memory_space<vmem>>, vector<128x128xf32>
    tpu.vector_store %arg4[%c0_9, %c0_10], %13 {strides = array<i32>} : memref<128x128xf32, #tpu.memory_space<vmem>>, vector<128x128xf32>,
    return
  }
  func.func @transform_0(%arg0: i32) -> (i32, i32) {
    %c0_i32 = arith.constant 0 : i32
    %c0_i32_0 = arith.constant 0 : i32
    return %arg0, %c0_i32 : i32, i32
  }
  func.func @transform_1(%arg0: i32) -> (i32, i32) {
    %c0_i32 = arith.constant 0 : i32
    %c0_i32_0 = arith.constant 0 : i32
    %c0_i32_1 = arith.constant 0 : i32
    return %c0_i32, %c0_i32_0 : i32, i32
  }
  func.func @transform_2(%arg0: i32) -> (i32, i32) {
    %c0_i32 = arith.constant 0 : i32
    %c0_i32_0 = arith.constant 0 : i32
    %c0_i32_1 = arith.constant 0 : i32
    return %c0_i32, %c0_i32_0 : i32, i32
  }
  func.func @transform_3(%arg0: i32) -> (i32, i32) {
    %c0_i32 = arith.constant 0 : i32
    %c0_i32_0 = arith.constant 0 : i32
    return %arg0, %c0_i32 : i32, i32
  }
}

</mosaic_0001>

<llo_original>
// kernel: tpu_custom_call.1
$region0: #{tpu_custom_call.1}
  #allocation0 [shape = 'u32[]', space=smem, size = 0x4, offset = 0x4, fixed_abs, tag = 'smem constant byte address 0x4 - core index']
  #allocation1 [shape = 'u32[144,128]{1,0:T(1,128)}', space=vmem, size = 0x12000, scoped, tag = 'internal scratch']
  %s0 = inlined_call_operand.hbm [shape: bf16[128,128], index: 0, kind: input, shape index: {}]
  %s1 = inlined_call_operand.hbm [shape: bf16[128,512], index: 1, kind: input, shape index: {}]
  %s2 = inlined_call_operand.hbm [shape: bf16[512,128], index: 2, kind: input, shape index: {}]
  %s3 = inlined_call_operand.hbm [shape: f32[128,128], index: 3, kind: output, shape index: {}]
  %s4 = sld [smem:[#allocation0]]
  $region34: #{tpu_custom_call.1} parent=0
    _
  %s6 = ssub.s32 1, %s4
  %s7 = scalar_select 0, %s6, %s4
  $region1: #{tpu_custom_call.1} parent=0
    #allocation2 [shape = 'u8[32768]{0}', space=vmem, size = 0x8000, scoped, tag = 'input window, operand 0, single buffered']
    #allocation3 [shape = 's32[1]{0}', space=sflag, size = 0x4, scoped, tag = 'scoped memory for tpu_custom_call.1']
    #allocation4 [shape = 's32[1]{0}', space=sflag, size = 0x4, scoped, tag = 'scoped memory for tpu_custom_call.1']
    #allocation5 [shape = 'u8[131072]{0}', space=vmem, size = 0x20000, scoped, tag = 'input window, operand 1, single buffered']
    #allocation6 [shape = 's32[1]{0}', space=sflag, size = 0x4, scoped, tag = 'scoped memory for tpu_custom_call.1']
    #allocation7 [shape = 'u8[131072]{0}', space=vmem, size = 0x20000, scoped, tag = 'input window, operand 2, single buffered']
    #allocation8 [shape = 'u8[65536]{0}', space=vmem, size = 0x10000, scoped, tag = 'output window, operand 0, single buffered']
    %8 = vsyncpa [#allocation3], 0
    %9 = vsyncpa [#allocation6], 0
    %10 = vsyncpa [#allocation4], 0
    // Predicated region
    $region2: #{tpu_custom_call.1} parent=1 // pred_check
      _
    $region3: #{tpu_custom_call.1} parent=1 // pred_check_branch
      %12 = sbr.rel (0) target = $region5
    $region4: #{tpu_custom_call.1} parent=1 // pred_region
      %s14 = ssub.s32 1024, 1024
      %15 = vsyncadd [#allocation3], %s14
      %s16 = sshll.u32 [#allocation2], 4
      %s17 = int_to_ptr.vmem [resolvable:$true] %s16
      %22 = dma.hbm_to_vmem [thread:$0]  %s0, 1024, %s17, [#allocation3], 64, 64, 4
    $region5: #{tpu_custom_call.1} parent=1 // pred_fallthru
      _
    // Predicated region
    $region6: #{tpu_custom_call.1} parent=1 // pred_check
      _
    $region7: #{tpu_custom_call.1} parent=1 // pred_check_branch
      %24 = sbr.rel (0) target = $region9
    $region8: #{tpu_custom_call.1} parent=1 // pred_region
      %s26 = ssub.s32 4096, 4096
      %27 = vsyncadd [#allocation6], %s26
      %s28 = sshll.u32 [#allocation5], 4
      %s29 = int_to_ptr.vmem [resolvable:$true] %s28
      %34 = dma.hbm_to_vmem [thread:$0]  %s1, 4096, %s29, [#allocation6], 256, 256, 16
    $region9: #{tpu_custom_call.1} parent=1 // pred_fallthru
      _
    // Predicated region
    $region10: #{tpu_custom_call.1} parent=1 // pred_check
      _
    $region11: #{tpu_custom_call.1} parent=1 // pred_check_branch
      %36 = sbr.rel (0) target = $region13
    $region12: #{tpu_custom_call.1} parent=1 // pred_region
      %s38 = ssub.s32 4096, 4096
      %39 = vsyncadd [#allocation6], %s38
      %s40 = sshll.u32 [#allocation7], 4
      %s41 = int_to_ptr.vmem [resolvable:$true] %s40
      %46 = dma.hbm_to_vmem [thread:$0]  %s2, 4096, %s41, [#allocation6], 64, 64, 4
    $region13: #{tpu_custom_call.1} parent=1 // pred_fallthru
      _
    // Predicated region
    $region14: #{tpu_custom_call.1} parent=1 // pred_check
      _
    $region15: #{tpu_custom_call.1} parent=1 // pred_check_branch
      %48 = sbr.rel (0) target = $region17
    $region16: #{tpu_custom_call.1} parent=1 // pred_region
      %49 = dma.done [#allocation3], 1024
    $region17: #{tpu_custom_call.1} parent=1 // pred_fallthru
      _
    // Predicated region
    $region18: #{tpu_custom_call.1} parent=1 // pred_check
      _
    $region19: #{tpu_custom_call.1} parent=1 // pred_check_branch
      %51 = sbr.rel (0) target = $region21
    $region20: #{tpu_custom_call.1} parent=1 // pred_region
      %52 = dma.done [#allocation6], 4096
    $region21: #{tpu_custom_call.1} parent=1 // pred_fallthru
      _
    // Predicated region
    $region22: #{tpu_custom_call.1} parent=1 // pred_check
      _
    $region23: #{tpu_custom_call.1} parent=1 // pred_check_branch
      %54 = sbr.rel (0) target = $region25
    $region24: #{tpu_custom_call.1} parent=1 // pred_region
      %55 = dma.done [#allocation6], 4096
    $region25: #{tpu_custom_call.1} parent=1 // pred_fallthru
      _
    %v57 = vld [vmem:[#allocation2] sm:$0xf]
    %v58 = vld [vmem:[#allocation2 + $0x4] sm:$0xf]
    %v59 = vld [vmem:[#allocation2 + $0x8] sm:$0xf]
    %v60 = vld [vmem:[#allocation2 + $0xc] sm:$0xf]
    %v61 = vld [vmem:[#allocation2 + $0x10] sm:$0xf]
    %v62 = vld [vmem:[#allocation2 + $0x14] sm:$0xf]
    %v63 = vld [vmem:[#allocation2 + $0x18] sm:$0xf]
    %v64 = vld [vmem:[#allocation2 + $0x1c] sm:$0xf]
    %v65 = vld [vmem:[#allocation2 + $0x20] sm:$0xf]
    %v66 = vld [vmem:[#allocation2 + $0x24] sm:$0xf]
    %v67 = vld [vmem:[#allocation2 + $0x28] sm:$0xf]
    %v68 = vld [vmem:[#allocation2 + $0x2c] sm:$0xf]
    %v69 = vld [vmem:[#allocation2 + $0x30] sm:$0xf]
    %v70 = vld [vmem:[#allocation2 + $0x34] sm:$0xf]
    %v71 = vld [vmem:[#allocation2 + $0x38] sm:$0xf]
    %v72 = vld [vmem:[#allocation2 + $0x3c] sm:$0xf]
    %v73 = vld [vmem:[#allocation5] sm:$0xff]
    %v74 = vld [vmem:[#allocation5 + $0x8] sm:$0xff]
    %v75 = vld [vmem:[#allocation5 + $0x10] sm:$0xff]
    %v76 = vld [vmem:[#allocation5 + $0x18] sm:$0xff]
    %v77 = vld [vmem:[#allocation5 + $0x20] sm:$0xff]
    %v78 = vld [vmem:[#allocation5 + $0x28] sm:$0xff]
    %v79 = vld [vmem:[#allocation5 + $0x30] sm:$0xff]
    %v80 = vld [vmem:[#allocation5 + $0x38] sm:$0xff]
    %v81 = vld [vmem:[#allocation5 + $0x40] sm:$0xff]
    %v82 = vld [vmem:[#allocation5 + $0x48] sm:$0xff]
    %v83 = vld [vmem:[#allocation5 + $0x50] sm:$0xff]
    %v84 = vld [vmem:[#allocation5 + $0x58] sm:$0xff]
    %v85 = vld [vmem:[#allocation5 + $0x60] sm:$0xff]
    %v86 = vld [vmem:[#allocation5 + $0x68] sm:$0xff]
    %v87 = vld [vmem:[#allocation5 + $0x70] sm:$0xff]
    %v88 = vld [vmem:[#allocation5 + $0x78] sm:$0xff]
    %v89 = vld [vmem:[#allocation5 + $0x80] sm:$0xff]
    %v90 = vld [vmem:[#allocation5 + $0x88] sm:$0xff]
    %v91 = vld [vmem:[#allocation5 + $0x90] sm:$0xff]
    %v92 = vld [vmem:[#allocation5 + $0x98] sm:$0xff]
    %v93 = vld [vmem:[#allocation5 + $0xa0] sm:$0xff]
    %v94 = vld [vmem:[#allocation5 + $0xa8] sm:$0xff]
    %v95 = vld [vmem:[#allocation5 + $0xb0] sm:$0xff]
    %v96 = vld [vmem:[#allocation5 + $0xb8] sm:$0xff]
    %v97 = vld [vmem:[#allocation5 + $0xc0] sm:$0xff]
    %v98 = vld [vmem:[#allocation5 + $0xc8] sm:$0xff]
    %v99 = vld [vmem:[#allocation5 + $0xd0] sm:$0xff]
    %v100 = vld [vmem:[#allocation5 + $0xd8] sm:$0xff]
    %v101 = vld [vmem:[#allocation5 + $0xe0] sm:$0xff]
    %v102 = vld [vmem:[#allocation5 + $0xe8] sm:$0xff]
    %v103 = vld [vmem:[#allocation5 + $0xf0] sm:$0xff]
    %v104 = vld [vmem:[#allocation5 + $0xf8] sm:$0xff]
    %v121 = vunpack.c.l.b16 %v57
    %v122 = vunpack.c.l.b16 %v58
    %v123 = vunpack.c.l.b16 %v59
    %v124 = vunpack.c.l.b16 %v60
    %v125 = vunpack.c.l.b16 %v61
    %v126 = vunpack.c.l.b16 %v62
    %v127 = vunpack.c.l.b16 %v63
    %v128 = vunpack.c.l.b16 %v64
    %v129 = vunpack.c.l.b16 %v65
    %v130 = vunpack.c.l.b16 %v66
    %v131 = vunpack.c.l.b16 %v67
    %v132 = vunpack.c.l.b16 %v68
    %v133 = vunpack.c.l.b16 %v69
    %v134 = vunpack.c.l.b16 %v70
    %v135 = vunpack.c.l.b16 %v71
    %v136 = vunpack.c.l.b16 %v72
    %v137 = vpack.c.b16 %v122, %v121
    %v138 = vpack.c.b16 %v124, %v123
    %v139 = vpack.c.b16 %v126, %v125
    %v140 = vpack.c.b16 %v128, %v127
    %v141 = vpack.c.b16 %v130, %v129
    %v142 = vpack.c.b16 %v132, %v131
    %v143 = vpack.c.b16 %v134, %v133
    %v144 = vpack.c.b16 %v136, %v135
    %v185 = vunpack.c.l.b16 %v73
    %v186 = vunpack.c.h.b16 %v73
    %v187 = vunpack.c.l.b16 %v74
    %v188 = vunpack.c.h.b16 %v74
    %v189 = vunpack.c.l.b16 %v75
    %v190 = vunpack.c.h.b16 %v75
    %v191 = vunpack.c.l.b16 %v76
    %v192 = vunpack.c.h.b16 %v76
    %v193 = vunpack.c.l.b16 %v77
    %v194 = vunpack.c.h.b16 %v77
    %v195 = vunpack.c.l.b16 %v78
    %v196 = vunpack.c.h.b16 %v78
    %v197 = vunpack.c.l.b16 %v79
    %v198 = vunpack.c.h.b16 %v79
    %v199 = vunpack.c.l.b16 %v80
    %v200 = vunpack.c.h.b16 %v80
    %v201 = vunpack.c.l.b16 %v81
    %v202 = vunpack.c.h.b16 %v81
    %v203 = vunpack.c.l.b16 %v82
    %v204 = vunpack.c.h.b16 %v82
    %v205 = vunpack.c.l.b16 %v83
    %v206 = vunpack.c.h.b16 %v83
    %v207 = vunpack.c.l.b16 %v84
    %v208 = vunpack.c.h.b16 %v84
    %v209 = vunpack.c.l.b16 %v85
    %v210 = vunpack.c.h.b16 %v85
    %v211 = vunpack.c.l.b16 %v86
    %v212 = vunpack.c.h.b16 %v86
    %v213 = vunpack.c.l.b16 %v87
    %v214 = vunpack.c.h.b16 %v87
    %v215 = vunpack.c.l.b16 %v88
    %v216 = vunpack.c.h.b16 %v88
    %v217 = vunpack.c.l.b16 %v89
    %v218 = vunpack.c.h.b16 %v89
    %v219 = vunpack.c.l.b16 %v90
    %v220 = vunpack.c.h.b16 %v90
    %v221 = vunpack.c.l.b16 %v91
    %v222 = vunpack.c.h.b16 %v91
    %v223 = vunpack.c.l.b16 %v92
    %v224 = vunpack.c.h.b16 %v92
    %v225 = vunpack.c.l.b16 %v93
    %v226 = vunpack.c.h.b16 %v93
    %v227 = vunpack.c.l.b16 %v94
    %v228 = vunpack.c.h.b16 %v94
    %v229 = vunpack.c.l.b16 %v95
    %v230 = vunpack.c.h.b16 %v95
    %v231 = vunpack.c.l.b16 %v96
    %v232 = vunpack.c.h.b16 %v96
    %v233 = vunpack.c.l.b16 %v97
    %v234 = vunpack.c.h.b16 %v97
    %v235 = vunpack.c.l.b16 %v98
    %v236 = vunpack.c.h.b16 %v98
    %v237 = vunpack.c.l.b16 %v99
    %v238 = vunpack.c.h.b16 %v99
    %v239 = vunpack.c.l.b16 %v100
    %v240 = vunpack.c.h.b16 %v100
    %v241 = vunpack.c.l.b16 %v101
    %v242 = vunpack.c.h.b16 %v101
    %v243 = vunpack.c.l.b16 %v102
    %v244 = vunpack.c.h.b16 %v102
    %v245 = vunpack.c.l.b16 %v103
    %v246 = vunpack.c.h.b16 %v103
    %v247 = vunpack.c.l.b16 %v104
    %v248 = vunpack.c.h.b16 %v104
    %v249 = vpack.c.b16 %v189, %v185
    %v250 = vpack.c.b16 %v190, %v186
    %v251 = vpack.c.b16 %v191, %v187
    %v252 = vpack.c.b16 %v192, %v188
    %v253 = vpack.c.b16 %v197, %v193
    %v254 = vpack.c.b16 %v198, %v194
    %v255 = vpack.c.b16 %v199, %v195
    %v256 = vpack.c.b16 %v200, %v196
    %v257 = vpack.c.b16 %v205, %v201
    %v258 = vpack.c.b16 %v206, %v202
    %v259 = vpack.c.b16 %v207, %v203
    %v260 = vpack.c.b16 %v208, %v204
    %v261 = vpack.c.b16 %v213, %v209
    %v262 = vpack.c.b16 %v214, %v210
    %v263 = vpack.c.b16 %v215, %v211
    %v264 = vpack.c.b16 %v216, %v212
    %v265 = vpack.c.b16 %v221, %v217
    %v266 = vpack.c.b16 %v222, %v218
    %v267 = vpack.c.b16 %v223, %v219
    %v268 = vpack.c.b16 %v224, %v220
    %v269 = vpack.c.b16 %v229, %v225
    %v270 = vpack.c.b16 %v230, %v226
    %v271 = vpack.c.b16 %v231, %v227
    %v272 = vpack.c.b16 %v232, %v228
    %v273 = vpack.c.b16 %v237, %v233
    %v274 = vpack.c.b16 %v238, %v234
    %v275 = vpack.c.b16 %v239, %v235
    %v276 = vpack.c.b16 %v240, %v236
    %v277 = vpack.c.b16 %v245, %v241
    %v278 = vpack.c.b16 %v246, %v242
    %v279 = vpack.c.b16 %v247, %v243
    %v280 = vpack.c.b16 %v248, %v244
    %313 = vmatprep.subr.bf16.mxu0 %v278
    %314 = vmatpush1.bf16.msra.mxu0 %v277
    %315 = vmatprep.subr.bf16.mxu0 %v274
    %316 = vmatpush1.bf16.msra.mxu0 %v273
    %317 = vmatprep.subr.bf16.mxu0 %v270
    %318 = vmatpush1.bf16.msra.mxu0 %v269
    %319 = vmatprep.subr.bf16.mxu0 %v266
    %320 = vmatpush1.bf16.msra.mxu0 %v265
    %321 = vmatprep.subr.bf16.mxu0 %v262
    %322 = vmatpush1.bf16.msra.mxu0 %v261
    %323 = vmatprep.subr.bf16.mxu0 %v258
    %324 = vmatpush1.bf16.msra.mxu0 %v257
    %325 = vmatprep.subr.bf16.mxu0 %v254
    %326 = vmatpush1.bf16.msra.mxu0 %v253
    %327 = vmatprep.subr.bf16.mxu0 %v250
    %328 = vmatpush1.bf16.msra.mxu0 %v249
    %329 = vmatprep.subr.bf16.mxu0 0
    %330 = vmatpush2.bf16.msra.mxu0 0
    %331 = vmatprep.subr.bf16.mxu0 0
    %332 = vmatpush2.bf16.msra.mxu0 0
    %333 = vmatprep.subr.bf16.mxu0 0
    %334 = vmatpush2.bf16.msra.mxu0 0
    %335 = vmatprep.subr.bf16.mxu0 0
    %336 = vmatpush2.bf16.msra.mxu0 0
    %337 = vmatprep.subr.bf16.mxu0 0
    %338 = vmatpush2.bf16.msra.mxu0 0
    %339 = vmatprep.subr.bf16.mxu0 0
    %340 = vmatpush2.bf16.msra.mxu0 0
    %341 = vmatprep.subr.bf16.mxu0 0
    %342 = vmatpush2.bf16.msra.mxu0 0
    %343 = vmatprep.subr.bf16.mxu0 0
    %344 = vmatpush2.bf16.msra.mxu0 0
    %345 = vmatprep.mubr.bf16.mxu0 0
    %346 = vmatmul.mubr.bf16.gmra.mxu0 %v137
    %v347 = vpop.f32.mrf.mxu0
    %v348 = vadd.f32 0.0, %v347
    %v349 = vpop.f32.mrf.mxu0
    %v350 = vadd.f32 0.0, %v349
    %v351 = vpop.f32.mrf.mxu0
    %v352 = vadd.f32 0.0, %v351
    %v353 = vpop.f32.mrf.mxu0
    %v354 = vadd.f32 0.0, %v353
    %355 = vmatprep.mubr.bf16.mxu0 0
    %356 = vmatmul.mubr.bf16.gmra.mxu0 %v138
    %v357 = vpop.f32.mrf.mxu0
    %v358 = vadd.f32 0.0, %v357
    %v359 = vpop.f32.mrf.mxu0
    %v360 = vadd.f32 0.0, %v359
    %v361 = vpop.f32.mrf.mxu0
    %v362 = vadd.f32 0.0, %v361
    %v363 = vpop.f32.mrf.mxu0
    %v364 = vadd.f32 0.0, %v363
    %365 = vmatprep.mubr.bf16.mxu0 0
    %366 = vmatmul.mubr.bf16.gmra.mxu0 %v139
    %v367 = vpop.f32.mrf.mxu0
    %v368 = vadd.f32 0.0, %v367
    %v369 = vpop.f32.mrf.mxu0
    %v370 = vadd.f32 0.0, %v369
    %v371 = vpop.f32.mrf.mxu0
    %v372 = vadd.f32 0.0, %v371
    %v373 = vpop.f32.mrf.mxu0
    %v374 = vadd.f32 0.0, %v373
    %375 = vmatprep.mubr.bf16.mxu0 0
    %376 = vmatmul.mubr.bf16.gmra.mxu0 %v140
    %v377 = vpop.f32.mrf.mxu0
    %v378 = vadd.f32 0.0, %v377
    %v379 = vpop.f32.mrf.mxu0
    %v380 = vadd.f32 0.0, %v379
    %v381 = vpop.f32.mrf.mxu0
    %v382 = vadd.f32 0.0, %v381
    %v383 = vpop.f32.mrf.mxu0
    %v384 = vadd.f32 0.0, %v383
    %385 = vmatprep.mubr.bf16.mxu0 0
    %386 = vmatmul.mubr.bf16.gmra.mxu0 %v141
    %v387 = vpop.f32.mrf.mxu0
    %v388 = vadd.f32 0.0, %v387
    %v389 = vpop.f32.mrf.mxu0
    %v390 = vadd.f32 0.0, %v389
    %v391 = vpop.f32.mrf.mxu0
    %v392 = vadd.f32 0.0, %v391
    %v393 = vpop.f32.mrf.mxu0
    %v394 = vadd.f32 0.0, %v393
    %395 = vmatprep.mubr.bf16.mxu0 0
    %396 = vmatmul.mubr.bf16.gmra.mxu0 %v142
    %v397 = vpop.f32.mrf.mxu0
    %v398 = vadd.f32 0.0, %v397
    %v399 = vpop.f32.mrf.mxu0
    %v400 = vadd.f32 0.0, %v399
    %v401 = vpop.f32.mrf.mxu0
    %v402 = vadd.f32 0.0, %v401
    %v403 = vpop.f32.mrf.mxu0
    %v404 = vadd.f32 0.0, %v403
    %405 = vmatprep.mubr.bf16.mxu0 0
    %406 = vmatmul.mubr.bf16.gmra.mxu0 %v143
    %v407 = vpop.f32.mrf.mxu0
    %v408 = vadd.f32 0.0, %v407
    %v409 = vpop.f32.mrf.mxu0
    %v410 = vadd.f32 0.0, %v409
    %v411 = vpop.f32.mrf.mxu0
    %v412 = vadd.f32 0.0, %v411
    %v413 = vpop.f32.mrf.mxu0
    %v414 = vadd.f32 0.0, %v413
    %415 = vmatprep.mubr.bf16.mxu0 0
    %416 = vmatmul.mubr.bf16.gmra.mxu0 %v144
    %v417 = vpop.f32.mrf.mxu0
    %v418 = vadd.f32 0.0, %v417
    %v419 = vpop.f32.mrf.mxu0
    %v420 = vadd.f32 0.0, %v419
    %v421 = vpop.f32.mrf.mxu0
    %v422 = vadd.f32 0.0, %v421
    %v423 = vpop.f32.mrf.mxu0
    %v424 = vadd.f32 0.0, %v423
    %425 = vdwg.mxu0
    %426 = vmatprep.subr.bf16.mxu0 %v280
    %427 = vmatpush1.bf16.msra.mxu0 %v279
    %428 = vmatprep.subr.bf16.mxu0 %v276
    %429 = vmatpush1.bf16.msra.mxu0 %v275
    %430 = vmatprep.subr.bf16.mxu0 %v272
    %431 = vmatpush1.bf16.msra.mxu0 %v271
    %432 = vmatprep.subr.bf16.mxu0 %v268
    %433 = vmatpush1.bf16.msra.mxu0 %v267
    %434 = vmatprep.subr.bf16.mxu0 %v264
    %435 = vmatpush1.bf16.msra.mxu0 %v263
    %436 = vmatprep.subr.bf16.mxu0 %v260
    %437 = vmatpush1.bf16.msra.mxu0 %v259
    %438 = vmatprep.subr.bf16.mxu0 %v256
    %439 = vmatpush1.bf16.msra.mxu0 %v255
    %440 = vmatprep.subr.bf16.mxu0 %v252
    %441 = vmatpush1.bf16.msra.mxu0 %v251
    %442 = vmatprep.subr.bf16.mxu0 0
    %443 = vmatpush2.bf16.msra.mxu0 0
    %444 = vmatprep.subr.bf16.mxu0 0
    %445 = vmatpush2.bf16.msra.mxu0 0
    %446 = vmatprep.subr.bf16.mxu0 0
    %447 = vmatpush2.bf16.msra.mxu0 0
    %448 = vmatprep.subr.bf16.mxu0 0
    %449 = vmatpush2.bf16.msra.mxu0 0
    %450 = vmatprep.subr.bf16.mxu0 0
    %451 = vmatpush2.bf16.msra.mxu0 0
    %452 = vmatprep.subr.bf16.mxu0 0
    %453 = vmatpush2.bf16.msra.mxu0 0
    %454 = vmatprep.subr.bf16.mxu0 0
    %455 = vmatpush2.bf16.msra.mxu0 0
    %456 = vmatprep.subr.bf16.mxu0 0
    %457 = vmatpush2.bf16.msra.mxu0 0
    %458 = vmatprep.mubr.bf16.mxu0 0
    %459 = vmatmul.mubr.bf16.gmra.mxu0 %v137
    %v460 = vpop.f32.mrf.mxu0
    %v461 = vadd.f32 0.0, %v460
    %v462 = vpop.f32.mrf.mxu0
    %v463 = vadd.f32 0.0, %v462
    %v464 = vpop.f32.mrf.mxu0
    %v465 = vadd.f32 0.0, %v464
    %v466 = vpop.f32.mrf.mxu0
    %v467 = vadd.f32 0.0, %v466
    %468 = vmatprep.mubr.bf16.mxu0 0
    %469 = vmatmul.mubr.bf16.gmra.mxu0 %v138
    %v470 = vpop.f32.mrf.mxu0
    %v471 = vadd.f32 0.0, %v470
    %v472 = vpop.f32.mrf.mxu0
    %v473 = vadd.f32 0.0, %v472
    %v474 = vpop.f32.mrf.mxu0
    %v475 = vadd.f32 0.0, %v474
    %v476 = vpop.f32.mrf.mxu0
    %v477 = vadd.f32 0.0, %v476
    %478 = vmatprep.mubr.bf16.mxu0 0
    %479 = vmatmul.mubr.bf16.gmra.mxu0 %v139
    %v480 = vpop.f32.mrf.mxu0
    %v481 = vadd.f32 0.0, %v480
    %v482 = vpop.f32.mrf.mxu0
    %v483 = vadd.f32 0.0, %v482
    %v484 = vpop.f32.mrf.mxu0
    %v485 = vadd.f32 0.0, %v484
    %v486 = vpop.f32.mrf.mxu0
    %v487 = vadd.f32 0.0, %v486
    %488 = vmatprep.mubr.bf16.mxu0 0
    %489 = vmatmul.mubr.bf16.gmra.mxu0 %v140
    %v490 = vpop.f32.mrf.mxu0
    %v491 = vadd.f32 0.0, %v490
    %v492 = vpop.f32.mrf.mxu0
    %v493 = vadd.f32 0.0, %v492
    %v494 = vpop.f32.mrf.mxu0
    %v495 = vadd.f32 0.0, %v494
    %v496 = vpop.f32.mrf.mxu0
    %v497 = vadd.f32 0.0, %v496
    %498 = vmatprep.mubr.bf16.mxu0 0
    %499 = vmatmul.mubr.bf16.gmra.mxu0 %v141
    %v500 = vpop.f32.mrf.mxu0
    %v501 = vadd.f32 0.0, %v500
    %v502 = vpop.f32.mrf.mxu0
    %v503 = vadd.f32 0.0, %v502
    %v504 = vpop.f32.mrf.mxu0
    %v505 = vadd.f32 0.0, %v504
    %v506 = vpop.f32.mrf.mxu0
    %v507 = vadd.f32 0.0, %v506
    %508 = vmatprep.mubr.bf16.mxu0 0
    %509 = vmatmul.mubr.bf16.gmra.mxu0 %v142
    %v510 = vpop.f32.mrf.mxu0
    %v511 = vadd.f32 0.0, %v510
    %v512 = vpop.f32.mrf.mxu0
    %v513 = vadd.f32 0.0, %v512
    %v514 = vpop.f32.mrf.mxu0
    %v515 = vadd.f32 0.0, %v514
    %v516 = vpop.f32.mrf.mxu0
    %v517 = vadd.f32 0.0, %v516
    %518 = vmatprep.mubr.bf16.mxu0 0
    %519 = vmatmul.mubr.bf16.gmra.mxu0 %v143
    %v520 = vpop.f32.mrf.mxu0
    %v521 = vadd.f32 0.0, %v520
    %v522 = vpop.f32.mrf.mxu0
    %v523 = vadd.f32 0.0, %v522
    %v524 = vpop.f32.mrf.mxu0
    %v525 = vadd.f32 0.0, %v524
    %v526 = vpop.f32.mrf.mxu0
    %v527 = vadd.f32 0.0, %v526
    %528 = vmatprep.mubr.bf16.mxu0 0
    %529 = vmatmul.mubr.bf16.gmra.mxu0 %v144
    %v530 = vpop.f32.mrf.mxu0
    %v531 = vadd.f32 0.0, %v530
    %v532 = vpop.f32.mrf.mxu0
    %v533 = vadd.f32 0.0, %v532
    %v534 = vpop.f32.mrf.mxu0
    %v535 = vadd.f32 0.0, %v534
    %v536 = vpop.f32.mrf.mxu0
    %v537 = vadd.f32 0.0, %v536
    %538 = vdwg.mxu0
    %v539 = vmul.f32 %v348, 0.5
    %v540 = vmul.f32 %v350, 0.5
    %v541 = vmul.f32 %v461, 0.5
    %v542 = vmul.f32 %v463, 0.5
    %v543 = vmul.f32 %v352, 0.5
    %v544 = vmul.f32 %v354, 0.5
    %v545 = vmul.f32 %v465, 0.5
    %v546 = vmul.f32 %v467, 0.5
    %v547 = vmul.f32 %v358, 0.5
    %v548 = vmul.f32 %v360, 0.5
    %v549 = vmul.f32 %v471, 0.5
    %v550 = vmul.f32 %v473, 0.5
    %v551 = vmul.f32 %v362, 0.5
    %v552 = vmul.f32 %v364, 0.5
    %v553 = vmul.f32 %v475, 0.5
    %v554 = vmul.f32 %v477, 0.5
    %v555 = vmul.f32 %v368, 0.5
    %v556 = vmul.f32 %v370, 0.5
    %v557 = vmul.f32 %v481, 0.5
    %v558 = vmul.f32 %v483, 0.5
    %v559 = vmul.f32 %v372, 0.5
    %v560 = vmul.f32 %v374, 0.5
    %v561 = vmul.f32 %v485, 0.5
    %v562 = vmul.f32 %v487, 0.5
    %v563 = vmul.f32 %v378, 0.5
    %v564 = vmul.f32 %v380, 0.5
    %v565 = vmul.f32 %v491, 0.5
    %v566 = vmul.f32 %v493, 0.5
    %v567 = vmul.f32 %v382, 0.5
    %v568 = vmul.f32 %v384, 0.5
    %v569 = vmul.f32 %v495, 0.5
    %v570 = vmul.f32 %v497, 0.5
    %v571 = vmul.f32 %v388, 0.5
    %v572 = vmul.f32 %v390, 0.5
    %v573 = vmul.f32 %v501, 0.5
    %v574 = vmul.f32 %v503, 0.5
    %v575 = vmul.f32 %v392, 0.5
    %v576 = vmul.f32 %v394, 0.5
    %v577 = vmul.f32 %v505, 0.5
    %v578 = vmul.f32 %v507, 0.5
    %v579 = vmul.f32 %v398, 0.5
    %v580 = vmul.f32 %v400, 0.5
    %v581 = vmul.f32 %v511, 0.5
    %v582 = vmul.f32 %v513, 0.5
    %v583 = vmul.f32 %v402, 0.5
    %v584 = vmul.f32 %v404, 0.5
    %v585 = vmul.f32 %v515, 0.5
    %v586 = vmul.f32 %v517, 0.5
    %v587 = vmul.f32 %v408, 0.5
    %v588 = vmul.f32 %v410, 0.5
    %v589 = vmul.f32 %v521, 0.5
    %v590 = vmul.f32 %v523, 0.5
    %v591 = vmul.f32 %v412, 0.5
    %v592 = vmul.f32 %v414, 0.5
    %v593 = vmul.f32 %v525, 0.5
    %v594 = vmul.f32 %v527, 0.5
    %v595 = vmul.f32 %v418, 0.5
    %v596 = vmul.f32 %v420, 0.5
    %v597 = vmul.f32 %v531, 0.5
    %v598 = vmul.f32 %v533, 0.5
    %v599 = vmul.f32 %v422, 0.5
    %v600 = vmul.f32 %v424, 0.5
    %v601 = vmul.f32 %v535, 0.5
    %v602 = vmul.f32 %v537, 0.5
    %v603 = vmul.f32 %v348, 0.70710677
    %v604 = vmul.f32 %v350, 0.70710677
    %v605 = vmul.f32 %v461, 0.70710677
    %v606 = vmul.f32 %v463, 0.70710677
    %v607 = vmul.f32 %v352, 0.70710677
    %v608 = vmul.f32 %v354, 0.70710677
    %v609 = vmul.f32 %v465, 0.70710677
    %v610 = vmul.f32 %v467, 0.70710677
    %v611 = vmul.f32 %v358, 0.70710677
    %v612 = vmul.f32 %v360, 0.70710677
    %v613 = vmul.f32 %v471, 0.70710677
    %v614 = vmul.f32 %v473, 0.70710677
    %v615 = vmul.f32 %v362, 0.70710677
    %v616 = vmul.f32 %v364, 0.70710677
    %v617 = vmul.f32 %v475, 0.70710677
    %v618 = vmul.f32 %v477, 0.70710677
    %v619 = vmul.f32 %v368, 0.70710677
    %v620 = vmul.f32 %v370, 0.70710677
    %v621 = vmul.f32 %v481, 0.70710677
    %v622 = vmul.f32 %v483, 0.70710677
    %v623 = vmul.f32 %v372, 0.70710677
    %v624 = vmul.f32 %v374, 0.70710677
    %v625 = vmul.f32 %v485, 0.70710677
    %v626 = vmul.f32 %v487, 0.70710677
    %v627 = vmul.f32 %v378, 0.70710677
    %v628 = vmul.f32 %v380, 0.70710677
    %v629 = vmul.f32 %v491, 0.70710677
    %v630 = vmul.f32 %v493, 0.70710677
    %v631 = vmul.f32 %v382, 0.70710677
    %v632 = vmul.f32 %v384, 0.70710677
    %v633 = vmul.f32 %v495, 0.70710677
    %v634 = vmul.f32 %v497, 0.70710677
    %v635 = vmul.f32 %v388, 0.70710677
    %v636 = vmul.f32 %v390, 0.70710677
    %v637 = vmul.f32 %v501, 0.70710677
    %v638 = vmul.f32 %v503, 0.70710677
    %v639 = vmul.f32 %v392, 0.70710677
    %v640 = vmul.f32 %v394, 0.70710677
    %v641 = vmul.f32 %v505, 0.70710677
    %v642 = vmul.f32 %v507, 0.70710677
    %v643 = vmul.f32 %v398, 0.70710677
    %v644 = vmul.f32 %v400, 0.70710677
    %v645 = vmul.f32 %v511, 0.70710677
    %v646 = vmul.f32 %v513, 0.70710677
    %v647 = vmul.f32 %v402, 0.70710677
    %v648 = vmul.f32 %v404, 0.70710677
    %v649 = vmul.f32 %v515, 0.70710677
    %v650 = vmul.f32 %v517, 0.70710677
    %v651 = vmul.f32 %v408, 0.70710677
    %v652 = vmul.f32 %v410, 0.70710677
    %v653 = vmul.f32 %v521, 0.70710677
    %v654 = vmul.f32 %v523, 0.70710677
    %v655 = vmul.f32 %v412, 0.70710677
    %v656 = vmul.f32 %v414, 0.70710677
    %v657 = vmul.f32 %v525, 0.70710677
    %v658 = vmul.f32 %v527, 0.70710677
    %v659 = vmul.f32 %v418, 0.70710677
    %v660 = vmul.f32 %v420, 0.70710677
    %v661 = vmul.f32 %v531, 0.70710677
    %v662 = vmul.f32 %v533, 0.70710677
    %v663 = vmul.f32 %v422, 0.70710677
    %v664 = vmul.f32 %v424, 0.70710677
    %v665 = vmul.f32 %v535, 0.70710677
    %v666 = vmul.f32 %v537, 0.70710677
    %v667 = verf.f32.pop %v603
    %v668 = verf.f32.pop %v604
    %v669 = verf.f32.pop %v605
    %v670 = verf.f32.pop %v606
    %v671 = verf.f32.pop %v607
    %v672 = verf.f32.pop %v608
    %v673 = verf.f32.pop %v609
    %v674 = verf.f32.pop %v610
    %v675 = verf.f32.pop %v611
    %v676 = verf.f32.pop %v612
    %v677 = verf.f32.pop %v613
    %v678 = verf.f32.pop %v614
    %v679 = verf.f32.pop %v615
    %v680 = verf.f32.pop %v616
    %v681 = verf.f32.pop %v617
    %v682 = verf.f32.pop %v618
    %v683 = verf.f32.pop %v619
    %v684 = verf.f32.pop %v620
    %v685 = verf.f32.pop %v621
    %v686 = verf.f32.pop %v622
    %v687 = verf.f32.pop %v623
    %v688 = verf.f32.pop %v624
    %v689 = verf.f32.pop %v625
    %v690 = verf.f32.pop %v626
    %v691 = verf.f32.pop %v627
    %v692 = verf.f32.pop %v628
    %v693 = verf.f32.pop %v629
    %v694 = verf.f32.pop %v630
    %v695 = verf.f32.pop %v631
    %v696 = verf.f32.pop %v632
    %v697 = verf.f32.pop %v633
    %v698 = verf.f32.pop %v634
    %v699 = verf.f32.pop %v635
    %v700 = verf.f32.pop %v636
    %v701 = verf.f32.pop %v637
    %v702 = verf.f32.pop %v638
    %v703 = verf.f32.pop %v639
    %v704 = verf.f32.pop %v640
    %v705 = verf.f32.pop %v641
    %v706 = verf.f32.pop %v642
    %v707 = verf.f32.pop %v643
    %v708 = verf.f32.pop %v644
    %v709 = verf.f32.pop %v645
    %v710 = verf.f32.pop %v646
    %v711 = verf.f32.pop %v647
    %v712 = verf.f32.pop %v648
    %v713 = verf.f32.pop %v649
    %v714 = verf.f32.pop %v650
    %v715 = verf.f32.pop %v651
    %v716 = verf.f32.pop %v652
    %v717 = verf.f32.pop %v653
    %v718 = verf.f32.pop %v654
    %v719 = verf.f32.pop %v655
    %v720 = verf.f32.pop %v656
    %v721 = verf.f32.pop %v657
    %v722 = verf.f32.pop %v658
    %v723 = verf.f32.pop %v659
    %v724 = verf.f32.pop %v660
    %v725 = verf.f32.pop %v661
    %v726 = verf.f32.pop %v662
    %v727 = verf.f32.pop %v663
    %v728 = verf.f32.pop %v664
    %v729 = verf.f32.pop %v665
    %v730 = verf.f32.pop %v666
    %v731 = vadd.f32 %v667, 1.0
    %v732 = vadd.f32 %v668, 1.0
    %v733 = vadd.f32 %v669, 1.0
    %v734 = vadd.f32 %v670, 1.0
    %v735 = vadd.f32 %v671, 1.0
    %v736 = vadd.f32 %v672, 1.0
    %v737 = vadd.f32 %v673, 1.0
    %v738 = vadd.f32 %v674, 1.0
    %v739 = vadd.f32 %v675, 1.0
    %v740 = vadd.f32 %v676, 1.0
    %v741 = vadd.f32 %v677, 1.0
    %v742 = vadd.f32 %v678, 1.0
    %v743 = vadd.f32 %v679, 1.0
    %v744 = vadd.f32 %v680, 1.0
    %v745 = vadd.f32 %v681, 1.0
    %v746 = vadd.f32 %v682, 1.0
    %v747 = vadd.f32 %v683, 1.0
    %v748 = vadd.f32 %v684, 1.0
    %v749 = vadd.f32 %v685, 1.0
    %v750 = vadd.f32 %v686, 1.0
    %v751 = vadd.f32 %v687, 1.0
    %v752 = vadd.f32 %v688, 1.0
    %v753 = vadd.f32 %v689, 1.0
    %v754 = vadd.f32 %v690, 1.0
    %v755 = vadd.f32 %v691, 1.0
    %v756 = vadd.f32 %v692, 1.0
    %v757 = vadd.f32 %v693, 1.0
    %v758 = vadd.f32 %v694, 1.0
    %v759 = vadd.f32 %v695, 1.0
    %v760 = vadd.f32 %v696, 1.0
    %v761 = vadd.f32 %v697, 1.0
    %v762 = vadd.f32 %v698, 1.0
    %v763 = vadd.f32 %v699, 1.0
    %v764 = vadd.f32 %v700, 1.0
    %v765 = vadd.f32 %v701, 1.0
    %v766 = vadd.f32 %v702, 1.0
    %v767 = vadd.f32 %v703, 1.0
    %v768 = vadd.f32 %v704, 1.0
    %v769 = vadd.f32 %v705, 1.0
    %v770 = vadd.f32 %v706, 1.0
    %v771 = vadd.f32 %v707, 1.0
    %v772 = vadd.f32 %v708, 1.0
    %v773 = vadd.f32 %v709, 1.0
    %v774 = vadd.f32 %v710, 1.0
    %v775 = vadd.f32 %v711, 1.0
    %v776 = vadd.f32 %v712, 1.0
    %v777 = vadd.f32 %v713, 1.0
    %v778 = vadd.f32 %v714, 1.0
    %v779 = vadd.f32 %v715, 1.0
    %v780 = vadd.f32 %v716, 1.0
    %v781 = vadd.f32 %v717, 1.0
    %v782 = vadd.f32 %v718, 1.0
    %v783 = vadd.f32 %v719, 1.0
    %v784 = vadd.f32 %v720, 1.0
    %v785 = vadd.f32 %v721, 1.0
    %v786 = vadd.f32 %v722, 1.0
    %v787 = vadd.f32 %v723, 1.0
    %v788 = vadd.f32 %v724, 1.0
    %v789 = vadd.f32 %v725, 1.0
    %v790 = vadd.f32 %v726, 1.0
    %v791 = vadd.f32 %v727, 1.0
    %v792 = vadd.f32 %v728, 1.0
    %v793 = vadd.f32 %v729, 1.0
    %v794 = vadd.f32 %v730, 1.0
    %v795 = vmul.f32 %v539, %v731
    %v796 = vmul.f32 %v540, %v732
    %v797 = vmul.f32 %v541, %v733
    %v798 = vmul.f32 %v542, %v734
    %v799 = vmul.f32 %v543, %v735
    %v800 = vmul.f32 %v544, %v736
    %v801 = vmul.f32 %v545, %v737
    %v802 = vmul.f32 %v546, %v738
    %v803 = vmul.f32 %v547, %v739
    %v804 = vmul.f32 %v548, %v740
    %v805 = vmul.f32 %v549, %v741
    %v806 = vmul.f32 %v550, %v742
    %v807 = vmul.f32 %v551, %v743
    %v808 = vmul.f32 %v552, %v744
    %v809 = vmul.f32 %v553, %v745
    %v810 = vmul.f32 %v554, %v746
    %v811 = vmul.f32 %v555, %v747
    %v812 = vmul.f32 %v556, %v748
    %v813 = vmul.f32 %v557, %v749
    %v814 = vmul.f32 %v558, %v750
    %v815 = vmul.f32 %v559, %v751
    %v816 = vmul.f32 %v560, %v752
    %v817 = vmul.f32 %v561, %v753
    %v818 = vmul.f32 %v562, %v754
    %v819 = vmul.f32 %v563, %v755
    %v820 = vmul.f32 %v564, %v756
    %v821 = vmul.f32 %v565, %v757
    %v822 = vmul.f32 %v566, %v758
    %v823 = vmul.f32 %v567, %v759
    %v824 = vmul.f32 %v568, %v760
    %v825 = vmul.f32 %v569, %v761
    %v826 = vmul.f32 %v570, %v762
    %v827 = vmul.f32 %v571, %v763
    %v828 = vmul.f32 %v572, %v764
    %v829 = vmul.f32 %v573, %v765
    %v830 = vmul.f32 %v574, %v766
    %v831 = vmul.f32 %v575, %v767
    %v832 = vmul.f32 %v576, %v768
    %v833 = vmul.f32 %v577, %v769
    %v834 = vmul.f32 %v578, %v770
    %v835 = vmul.f32 %v579, %v771
    %v836 = vmul.f32 %v580, %v772
    %v837 = vmul.f32 %v581, %v773
    %v838 = vmul.f32 %v582, %v774
    %v839 = vmul.f32 %v583, %v775
    %v840 = vmul.f32 %v584, %v776
    %v841 = vmul.f32 %v585, %v777
    %v842 = vmul.f32 %v586, %v778
    %v843 = vmul.f32 %v587, %v779
    %v844 = vmul.f32 %v588, %v780
    %v845 = vmul.f32 %v589, %v781
    %v846 = vmul.f32 %v590, %v782
    %v847 = vmul.f32 %v591, %v783
    %v848 = vmul.f32 %v592, %v784
    %v849 = vmul.f32 %v593, %v785
    %v850 = vmul.f32 %v594, %v786
    %v851 = vmul.f32 %v595, %v787
    %v852 = vmul.f32 %v596, %v788
    %v853 = vmul.f32 %v597, %v789
    %v854 = vmul.f32 %v598, %v790
    %v855 = vmul.f32 %v599, %v791
    %v856 = vmul.f32 %v600, %v792
    %v857 = vmul.f32 %v601, %v793
    %v858 = vmul.f32 %v602, %v794
    %v859 = vpack.c.bf16 %v799, %v795
    %v860 = vpack.c.bf16 %v800, %v796
    %v861 = vpack.c.bf16 %v801, %v797
    %v862 = vpack.c.bf16 %v802, %v798
    %v863 = vpack.c.bf16 %v807, %v803
    %v864 = vpack.c.bf16 %v808, %v804
    %v865 = vpack.c.bf16 %v809, %v805
    %v866 = vpack.c.bf16 %v810, %v806
    %v867 = vpack.c.bf16 %v815, %v811
    %v868 = vpack.c.bf16 %v816, %v812
    %v869 = vpack.c.bf16 %v817, %v813
    %v870 = vpack.c.bf16 %v818, %v814
    %v871 = vpack.c.bf16 %v823, %v819
    %v872 = vpack.c.bf16 %v824, %v820
    %v873 = vpack.c.bf16 %v825, %v821
    %v874 = vpack.c.bf16 %v826, %v822
    %v875 = vpack.c.bf16 %v831, %v827
    %v876 = vpack.c.bf16 %v832, %v828
    %v877 = vpack.c.bf16 %v833, %v829
    %v878 = vpack.c.bf16 %v834, %v830
    %v879 = vpack.c.bf16 %v839, %v835
    %v880 = vpack.c.bf16 %v840, %v836
    %v881 = vpack.c.bf16 %v841, %v837
    %v882 = vpack.c.bf16 %v842, %v838
    %v883 = vpack.c.bf16 %v847, %v843
    %v884 = vpack.c.bf16 %v848, %v844
    %v885 = vpack.c.bf16 %v849, %v845
    %v886 = vpack.c.bf16 %v850, %v846
    %v887 = vpack.c.bf16 %v855, %v851
    %v888 = vpack.c.bf16 %v856, %v852
    %v889 = vpack.c.bf16 %v857, %v853
    %v890 = vpack.c.bf16 %v858, %v854
    %v891 = vld [vmem:[#allocation7] sm:$0xf]
    %v892 = vld [vmem:[#allocation7 + $0x4] sm:$0xf]
    %v893 = vld [vmem:[#allocation7 + $0x8] sm:$0xf]
    %v894 = vld [vmem:[#allocation7 + $0xc] sm:$0xf]
    %v895 = vld [vmem:[#allocation7 + $0x10] sm:$0xf]
    %v896 = vld [vmem:[#allocation7 + $0x14] sm:$0xf]
    %v897 = vld [vmem:[#allocation7 + $0x18] sm:$0xf]
    %v898 = vld [vmem:[#allocation7 + $0x1c] sm:$0xf]
    %v899 = vld [vmem:[#allocation7 + $0x20] sm:$0xf]
    %v900 = vld [vmem:[#allocation7 + $0x24] sm:$0xf]
    %v901 = vld [vmem:[#allocation7 + $0x28] sm:$0xf]
    %v902 = vld [vmem:[#allocation7 + $0x2c] sm:$0xf]
    %v903 = vld [vmem:[#allocation7 + $0x30] sm:$0xf]
    %v904 = vld [vmem:[#allocation7 + $0x34] sm:$0xf]
    %v905 = vld [vmem:[#allocation7 + $0x38] sm:$0xf]
    %v906 = vld [vmem:[#allocation7 + $0x3c] sm:$0xf]
    %v907 = vld [vmem:[#allocation7 + $0x40] sm:$0xf]
    %v908 = vld [vmem:[#allocation7 + $0x44] sm:$0xf]
    %v909 = vld [vmem:[#allocation7 + $0x48] sm:$0xf]
    %v910 = vld [vmem:[#allocation7 + $0x4c] sm:$0xf]
    %v911 = vld [vmem:[#allocation7 + $0x50] sm:$0xf]
    %v912 = vld [vmem:[#allocation7 + $0x54] sm:$0xf]
    %v913 = vld [vmem:[#allocation7 + $0x58] sm:$0xf]
    %v914 = vld [vmem:[#allocation7 + $0x5c] sm:$0xf]
    %v915 = vld [vmem:[#allocation7 + $0x60] sm:$0xf]
    %v916 = vld [vmem:[#allocation7 + $0x64] sm:$0xf]
    %v917 = vld [vmem:[#allocation7 + $0x68] sm:$0xf]
    %v918 = vld [vmem:[#allocation7 + $0x6c] sm:$0xf]
    %v919 = vld [vmem:[#allocation7 + $0x70] sm:$0xf]
    %v920 = vld [vmem:[#allocation7 + $0x74] sm:$0xf]
    %v921 = vld [vmem:[#allocation7 + $0x78] sm:$0xf]
    %v922 = vld [vmem:[#allocation7 + $0x7c] sm:$0xf]
    %v923 = vld [vmem:[#allocation7 + $0x80] sm:$0xf]
    %v924 = vld [vmem:[#allocation7 + $0x84] sm:$0xf]
    %v925 = vld [vmem:[#allocation7 + $0x88] sm:$0xf]
    %v926 = vld [vmem:[#allocation7 + $0x8c] sm:$0xf]
    %v927 = vld [vmem:[#allocation7 + $0x90] sm:$0xf]
    %v928 = vld [vmem:[#allocation7 + $0x94] sm:$0xf]
    %v929 = vld [vmem:[#allocation7 + $0x98] sm:$0xf]
    %v930 = vld [vmem:[#allocation7 + $0x9c] sm:$0xf]
    %v931 = vld [vmem:[#allocation7 + $0xa0] sm:$0xf]
    %v932 = vld [vmem:[#allocation7 + $0xa4] sm:$0xf]
    %v933 = vld [vmem:[#allocation7 + $0xa8] sm:$0xf]
    %v934 = vld [vmem:[#allocation7 + $0xac] sm:$0xf]
    %v935 = vld [vmem:[#allocation7 + $0xb0] sm:$0xf]
    %v936 = vld [vmem:[#allocation7 + $0xb4] sm:$0xf]
    %v937 = vld [vmem:[#allocation7 + $0xb8] sm:$0xf]
    %v938 = vld [vmem:[#allocation7 + $0xbc] sm:$0xf]
    %v939 = vld [vmem:[#allocation7 + $0xc0] sm:$0xf]
    %v940 = vld [vmem:[#allocation7 + $0xc4] sm:$0xf]
    %v941 = vld [vmem:[#allocation7 + $0xc8] sm:$0xf]
    %v942 = vld [vmem:[#allocation7 + $0xcc] sm:$0xf]
    %v943 = vld [vmem:[#allocation7 + $0xd0] sm:$0xf]
    %v944 = vld [vmem:[#allocation7 + $0xd4] sm:$0xf]
    %v945 = vld [vmem:[#allocation7 + $0xd8] sm:$0xf]
    %v946 = vld [vmem:[#allocation7 + $0xdc] sm:$0xf]
    %v947 = vld [vmem:[#allocation7 + $0xe0] sm:$0xf]
    %v948 = vld [vmem:[#allocation7 + $0xe4] sm:$0xf]
    %v949 = vld [vmem:[#allocation7 + $0xe8] sm:$0xf]
    %v950 = vld [vmem:[#allocation7 + $0xec] sm:$0xf]
    %v951 = vld [vmem:[#allocation7 + $0xf0] sm:$0xf]
    %v952 = vld [vmem:[#allocation7 + $0xf4] sm:$0xf]
    %v953 = vld [vmem:[#allocation7 + $0xf8] sm:$0xf]
    %v954 = vld [vmem:[#allocation7 + $0xfc] sm:$0xf]
    %v1019 = vunpack.c.l.b16 %v891
    %v1020 = vunpack.c.l.b16 %v892
    %v1021 = vunpack.c.l.b16 %v893
    %v1022 = vunpack.c.l.b16 %v894
    %v1023 = vunpack.c.l.b16 %v895
    %v1024 = vunpack.c.l.b16 %v896
    %v1025 = vunpack.c.l.b16 %v897
    %v1026 = vunpack.c.l.b16 %v898
    %v1027 = vunpack.c.l.b16 %v899
    %v1028 = vunpack.c.l.b16 %v900
    %v1029 = vunpack.c.l.b16 %v901
    %v1030 = vunpack.c.l.b16 %v902
    %v1031 = vunpack.c.l.b16 %v903
    %v1032 = vunpack.c.l.b16 %v904
    %v1033 = vunpack.c.l.b16 %v905
    %v1034 = vunpack.c.l.b16 %v906
    %v1035 = vunpack.c.l.b16 %v907
    %v1036 = vunpack.c.l.b16 %v908
    %v1037 = vunpack.c.l.b16 %v909
    %v1038 = vunpack.c.l.b16 %v910
    %v1039 = vunpack.c.l.b16 %v911
    %v1040 = vunpack.c.l.b16 %v912
    %v1041 = vunpack.c.l.b16 %v913
    %v1042 = vunpack.c.l.b16 %v914
    %v1043 = vunpack.c.l.b16 %v915
    %v1044 = vunpack.c.l.b16 %v916
    %v1045 = vunpack.c.l.b16 %v917
    %v1046 = vunpack.c.l.b16 %v918
    %v1047 = vunpack.c.l.b16 %v919
    %v1048 = vunpack.c.l.b16 %v920
    %v1049 = vunpack.c.l.b16 %v921
    %v1050 = vunpack.c.l.b16 %v922
    %v1051 = vunpack.c.l.b16 %v923
    %v1052 = vunpack.c.l.b16 %v924
    %v1053 = vunpack.c.l.b16 %v925
    %v1054 = vunpack.c.l.b16 %v926
    %v1055 = vunpack.c.l.b16 %v927
    %v1056 = vunpack.c.l.b16 %v928
    %v1057 = vunpack.c.l.b16 %v929
    %v1058 = vunpack.c.l.b16 %v930
    %v1059 = vunpack.c.l.b16 %v931
    %v1060 = vunpack.c.l.b16 %v932
    %v1061 = vunpack.c.l.b16 %v933
    %v1062 = vunpack.c.l.b16 %v934
    %v1063 = vunpack.c.l.b16 %v935
    %v1064 = vunpack.c.l.b16 %v936
    %v1065 = vunpack.c.l.b16 %v937
    %v1066 = vunpack.c.l.b16 %v938
    %v1067 = vunpack.c.l.b16 %v939
    %v1068 = vunpack.c.l.b16 %v940
    %v1069 = vunpack.c.l.b16 %v941
    %v1070 = vunpack.c.l.b16 %v942
    %v1071 = vunpack.c.l.b16 %v943
    %v1072 = vunpack.c.l.b16 %v944
    %v1073 = vunpack.c.l.b16 %v945
    %v1074 = vunpack.c.l.b16 %v946
    %v1075 = vunpack.c.l.b16 %v947
    %v1076 = vunpack.c.l.b16 %v948
    %v1077 = vunpack.c.l.b16 %v949
    %v1078 = vunpack.c.l.b16 %v950
    %v1079 = vunpack.c.l.b16 %v951
    %v1080 = vunpack.c.l.b16 %v952
    %v1081 = vunpack.c.l.b16 %v953
    %v1082 = vunpack.c.l.b16 %v954
    %v1083 = vpack.c.b16 %v1020, %v1019
    %v1084 = vpack.c.b16 %v1022, %v1021
    %v1085 = vpack.c.b16 %v1024, %v1023
    %v1086 = vpack.c.b16 %v1026, %v1025
    %v1087 = vpack.c.b16 %v1028, %v1027
    %v1088 = vpack.c.b16 %v1030, %v1029
    %v1089 = vpack.c.b16 %v1032, %v1031
    %v1090 = vpack.c.b16 %v1034, %v1033
    %v1091 = vpack.c.b16 %v1036, %v1035
    %v1092 = vpack.c.b16 %v1038, %v1037
    %v1093 = vpack.c.b16 %v1040, %v1039
    %v1094 = vpack.c.b16 %v1042, %v1041
    %v1095 = vpack.c.b16 %v1044, %v1043
    %v1096 = vpack.c.b16 %v1046, %v1045
    %v1097 = vpack.c.b16 %v1048, %v1047
    %v1098 = vpack.c.b16 %v1050, %v1049
    %v1099 = vpack.c.b16 %v1052, %v1051
    %v1100 = vpack.c.b16 %v1054, %v1053
    %v1101 = vpack.c.b16 %v1056, %v1055
    %v1102 = vpack.c.b16 %v1058, %v1057
    %v1103 = vpack.c.b16 %v1060, %v1059
    %v1104 = vpack.c.b16 %v1062, %v1061
    %v1105 = vpack.c.b16 %v1064, %v1063
    %v1106 = vpack.c.b16 %v1066, %v1065
    %v1107 = vpack.c.b16 %v1068, %v1067
    %v1108 = vpack.c.b16 %v1070, %v1069
    %v1109 = vpack.c.b16 %v1072, %v1071
    %v1110 = vpack.c.b16 %v1074, %v1073
    %v1111 = vpack.c.b16 %v1076, %v1075
    %v1112 = vpack.c.b16 %v1078, %v1077
    %v1113 = vpack.c.b16 %v1080, %v1079
    %v1114 = vpack.c.b16 %v1082, %v1081
    %1147 = vmatprep.subr.bf16.mxu0 0
    %1148 = vmatpush1.bf16.msra.mxu0 %v1090
    %1149 = vmatprep.subr.bf16.mxu0 0
    %1150 = vmatpush1.bf16.msra.mxu0 %v1089
    %1151 = vmatprep.subr.bf16.mxu0 0
    %1152 = vmatpush1.bf16.msra.mxu0 %v1088
    %1153 = vmatprep.subr.bf16.mxu0 0
    %1154 = vmatpush1.bf16.msra.mxu0 %v1087
    %1155 = vmatprep.subr.bf16.mxu0 0
    %1156 = vmatpush1.bf16.msra.mxu0 %v1086
    %1157 = vmatprep.subr.bf16.mxu0 0
    %1158 = vmatpush1.bf16.msra.mxu0 %v1085
    %1159 = vmatprep.subr.bf16.mxu0 0
    %1160 = vmatpush1.bf16.msra.mxu0 %v1084
    %1161 = vmatprep.subr.bf16.mxu0 0
    %1162 = vmatpush1.bf16.msra.mxu0 %v1083
    %1163 = vmatprep.subr.bf16.mxu0 0
    %1164 = vmatpush2.bf16.msra.mxu0 %v1098
    %1165 = vmatprep.subr.bf16.mxu0 0
    %1166 = vmatpush2.bf16.msra.mxu0 %v1097
    %1167 = vmatprep.subr.bf16.mxu0 0
    %1168 = vmatpush2.bf16.msra.mxu0 %v1096
    %1169 = vmatprep.subr.bf16.mxu0 0
    %1170 = vmatpush2.bf16.msra.mxu0 %v1095
    %1171 = vmatprep.subr.bf16.mxu0 0
    %1172 = vmatpush2.bf16.msra.mxu0 %v1094
    %1173 = vmatprep.subr.bf16.mxu0 0
    %1174 = vmatpush2.bf16.msra.mxu0 %v1093
    %1175 = vmatprep.subr.bf16.mxu0 0
    %1176 = vmatpush2.bf16.msra.mxu0 %v1092
    %1177 = vmatprep.subr.bf16.mxu0 0
    %1178 = vmatpush2.bf16.msra.mxu0 %v1091
    %1179 = vmatprep.mubr.bf16.mxu0 %v860
    %1180 = vmatmul.mubr.bf16.gmra.mxu0 %v859
    %v1181 = vpop.f32.mrf.mxu0
    %v1182 = vadd.f32 0.0, %v1181
    %v1183 = vpop.f32.mrf.mxu0
    %v1184 = vpop.f32.mrf.mxu0
    %v1185 = vadd.f32 0.0, %v1184
    %v1186 = vpop.f32.mrf.mxu0
    %1187 = vmatprep.mubr.bf16.mxu0 %v864
    %1188 = vmatmul.mubr.bf16.gmra.mxu0 %v863
    %v1189 = vpop.f32.mrf.mxu0
    %v1190 = vadd.f32 0.0, %v1189
    %v1191 = vpop.f32.mrf.mxu0
    %v1192 = vpop.f32.mrf.mxu0
    %v1193 = vadd.f32 0.0, %v1192
    %v1194 = vpop.f32.mrf.mxu0
    %1195 = vmatprep.mubr.bf16.mxu0 %v868
    %1196 = vmatmul.mubr.bf16.gmra.mxu0 %v867
    %v1197 = vpop.f32.mrf.mxu0
    %v1198 = vadd.f32 0.0, %v1197
    %v1199 = vpop.f32.mrf.mxu0
    %v1200 = vpop.f32.mrf.mxu0
    %v1201 = vadd.f32 0.0, %v1200
    %v1202 = vpop.f32.mrf.mxu0
    %1203 = vmatprep.mubr.bf16.mxu0 %v872
    %1204 = vmatmul.mubr.bf16.gmra.mxu0 %v871
    %v1205 = vpop.f32.mrf.mxu0
    %v1206 = vadd.f32 0.0, %v1205
    %v1207 = vpop.f32.mrf.mxu0
    %v1208 = vpop.f32.mrf.mxu0
    %v1209 = vadd.f32 0.0, %v1208
    %v1210 = vpop.f32.mrf.mxu0
    %1211 = vmatprep.mubr.bf16.mxu0 %v876
    %1212 = vmatmul.mubr.bf16.gmra.mxu0 %v875
    %v1213 = vpop.f32.mrf.mxu0
    %v1214 = vadd.f32 0.0, %v1213
    %v1215 = vpop.f32.mrf.mxu0
    %v1216 = vpop.f32.mrf.mxu0
    %v1217 = vadd.f32 0.0, %v1216
    %v1218 = vpop.f32.mrf.mxu0
    %1219 = vmatprep.mubr.bf16.mxu0 %v880
    %1220 = vmatmul.mubr.bf16.gmra.mxu0 %v879
    %v1221 = vpop.f32.mrf.mxu0
    %v1222 = vadd.f32 0.0, %v1221
    %v1223 = vpop.f32.mrf.mxu0
    %v1224 = vpop.f32.mrf.mxu0
    %v1225 = vadd.f32 0.0, %v1224
    %v1226 = vpop.f32.mrf.mxu0
    %1227 = vmatprep.mubr.bf16.mxu0 %v884
    %1228 = vmatmul.mubr.bf16.gmra.mxu0 %v883
    %v1229 = vpop.f32.mrf.mxu0
    %v1230 = vadd.f32 0.0, %v1229
    %v1231 = vpop.f32.mrf.mxu0
    %v1232 = vpop.f32.mrf.mxu0
    %v1233 = vadd.f32 0.0, %v1232
    %v1234 = vpop.f32.mrf.mxu0
    %1235 = vmatprep.mubr.bf16.mxu0 %v888
    %1236 = vmatmul.mubr.bf16.gmra.mxu0 %v887
    %v1237 = vpop.f32.mrf.mxu0
    %v1238 = vadd.f32 0.0, %v1237
    %v1239 = vpop.f32.mrf.mxu0
    %v1240 = vpop.f32.mrf.mxu0
    %v1241 = vadd.f32 0.0, %v1240
    %v1242 = vpop.f32.mrf.mxu0
    %1243 = vdwg.mxu0
    %1244 = vmatprep.subr.bf16.mxu0 0
    %1245 = vmatpush1.bf16.msra.mxu0 %v1106
    %1246 = vmatprep.subr.bf16.mxu0 0
    %1247 = vmatpush1.bf16.msra.mxu0 %v1105
    %1248 = vmatprep.subr.bf16.mxu0 0
    %1249 = vmatpush1.bf16.msra.mxu0 %v1104
    %1250 = vmatprep.subr.bf16.mxu0 0
    %1251 = vmatpush1.bf16.msra.mxu0 %v1103
    %1252 = vmatprep.subr.bf16.mxu0 0
    %1253 = vmatpush1.bf16.msra.mxu0 %v1102
    %1254 = vmatprep.subr.bf16.mxu0 0
    %1255 = vmatpush1.bf16.msra.mxu0 %v1101
    %1256 = vmatprep.subr.bf16.mxu0 0
    %1257 = vmatpush1.bf16.msra.mxu0 %v1100
    %1258 = vmatprep.subr.bf16.mxu0 0
    %1259 = vmatpush1.bf16.msra.mxu0 %v1099
    %1260 = vmatprep.subr.bf16.mxu0 0
    %1261 = vmatpush2.bf16.msra.mxu0 %v1114
    %1262 = vmatprep.subr.bf16.mxu0 0
    %1263 = vmatpush2.bf16.msra.mxu0 %v1113
    %1264 = vmatprep.subr.bf16.mxu0 0
    %1265 = vmatpush2.bf16.msra.mxu0 %v1112
    %1266 = vmatprep.subr.bf16.mxu0 0
    %1267 = vmatpush2.bf16.msra.mxu0 %v1111
    %1268 = vmatprep.subr.bf16.mxu0 0
    %1269 = vmatpush2.bf16.msra.mxu0 %v1110
    %1270 = vmatprep.subr.bf16.mxu0 0
    %1271 = vmatpush2.bf16.msra.mxu0 %v1109
    %1272 = vmatprep.subr.bf16.mxu0 0
    %1273 = vmatpush2.bf16.msra.mxu0 %v1108
    %1274 = vmatprep.subr.bf16.mxu0 0
    %1275 = vmatpush2.bf16.msra.mxu0 %v1107
    %1276 = vmatprep.mubr.bf16.mxu0 %v862
    %1277 = vmatmul.mubr.bf16.gmra.mxu0 %v861
    %v1278 = vpop.f32.mrf.mxu0
    %v1279 = vadd.f32 %v1182, %v1278
    %v1280 = vpop.f32.mrf.mxu0
    %v1281 = vpop.f32.mrf.mxu0
    %v1282 = vadd.f32 %v1185, %v1281
    %v1283 = vpop.f32.mrf.mxu0
    %1284 = vmatprep.mubr.bf16.mxu0 %v866
    %1285 = vmatmul.mubr.bf16.gmra.mxu0 %v865
    %v1286 = vpop.f32.mrf.mxu0
    %v1287 = vadd.f32 %v1190, %v1286
    %v1288 = vpop.f32.mrf.mxu0
    %v1289 = vpop.f32.mrf.mxu0
    %v1290 = vadd.f32 %v1193, %v1289
    %v1291 = vpop.f32.mrf.mxu0
    %1292 = vmatprep.mubr.bf16.mxu0 %v870
    %1293 = vmatmul.mubr.bf16.gmra.mxu0 %v869
    %v1294 = vpop.f32.mrf.mxu0
    %v1295 = vadd.f32 %v1198, %v1294
    %v1296 = vpop.f32.mrf.mxu0
    %v1297 = vpop.f32.mrf.mxu0
    %v1298 = vadd.f32 %v1201, %v1297
    %v1299 = vpop.f32.mrf.mxu0
    %1300 = vmatprep.mubr.bf16.mxu0 %v874
    %1301 = vmatmul.mubr.bf16.gmra.mxu0 %v873
    %v1302 = vpop.f32.mrf.mxu0
    %v1303 = vadd.f32 %v1206, %v1302
    %v1304 = vpop.f32.mrf.mxu0
    %v1305 = vpop.f32.mrf.mxu0
    %v1306 = vadd.f32 %v1209, %v1305
    %v1307 = vpop.f32.mrf.mxu0
    %1308 = vmatprep.mubr.bf16.mxu0 %v878
    %1309 = vmatmul.mubr.bf16.gmra.mxu0 %v877
    %v1310 = vpop.f32.mrf.mxu0
    %v1311 = vadd.f32 %v1214, %v1310
    %v1312 = vpop.f32.mrf.mxu0
    %v1313 = vpop.f32.mrf.mxu0
    %v1314 = vadd.f32 %v1217, %v1313
    %v1315 = vpop.f32.mrf.mxu0
    %1316 = vmatprep.mubr.bf16.mxu0 %v882
    %1317 = vmatmul.mubr.bf16.gmra.mxu0 %v881
    %v1318 = vpop.f32.mrf.mxu0
    %v1319 = vadd.f32 %v1222, %v1318
    %v1320 = vpop.f32.mrf.mxu0
    %v1321 = vpop.f32.mrf.mxu0
    %v1322 = vadd.f32 %v1225, %v1321
    %v1323 = vpop.f32.mrf.mxu0
    %1324 = vmatprep.mubr.bf16.mxu0 %v886
    %1325 = vmatmul.mubr.bf16.gmra.mxu0 %v885
    %v1326 = vpop.f32.mrf.mxu0
    %v1327 = vadd.f32 %v1230, %v1326
    %v1328 = vpop.f32.mrf.mxu0
    %v1329 = vpop.f32.mrf.mxu0
    %v1330 = vadd.f32 %v1233, %v1329
    %v1331 = vpop.f32.mrf.mxu0
    %1332 = vmatprep.mubr.bf16.mxu0 %v890
    %1333 = vmatmul.mubr.bf16.gmra.mxu0 %v889
    %v1334 = vpop.f32.mrf.mxu0
    %v1335 = vadd.f32 %v1238, %v1334
    %v1336 = vpop.f32.mrf.mxu0
    %v1337 = vpop.f32.mrf.mxu0
    %v1338 = vadd.f32 %v1241, %v1337
    %v1339 = vpop.f32.mrf.mxu0
    %1340 = vdwg.mxu0
    %1341 = vst [vmem:[#allocation8] sm:$0xff] %v1279
    %1342 = vst [vmem:[#allocation8 + $0x8] sm:$0xff] %v1282
    %1343 = vst [vmem:[#allocation8 + $0x10] sm:$0xff] %v1287
    %1344 = vst [vmem:[#allocation8 + $0x18] sm:$0xff] %v1290
    %1345 = vst [vmem:[#allocation8 + $0x20] sm:$0xff] %v1295
    %1346 = vst [vmem:[#allocation8 + $0x28] sm:$0xff] %v1298
    %1347 = vst [vmem:[#allocation8 + $0x30] sm:$0xff] %v1303
    %1348 = vst [vmem:[#allocation8 + $0x38] sm:$0xff] %v1306
    %1349 = vst [vmem:[#allocation8 + $0x40] sm:$0xff] %v1311
    %1350 = vst [vmem:[#allocation8 + $0x48] sm:$0xff] %v1314
    %1351 = vst [vmem:[#allocation8 + $0x50] sm:$0xff] %v1319
    %1352 = vst [vmem:[#allocation8 + $0x58] sm:$0xff] %v1322
    %1353 = vst [vmem:[#allocation8 + $0x60] sm:$0xff] %v1327
    %1354 = vst [vmem:[#allocation8 + $0x68] sm:$0xff] %v1330
    %1355 = vst [vmem:[#allocation8 + $0x70] sm:$0xff] %v1335
    %1356 = vst [vmem:[#allocation8 + $0x78] sm:$0xff] %v1338
    // Predicated region
    $region26: #{tpu_custom_call.1} parent=1 // pred_check
      _
    $region27: #{tpu_custom_call.1} parent=1 // pred_check_branch
      %1358 = sbr.rel (0) target = $region29
    $region28: #{tpu_custom_call.1} parent=1 // pred_region
      %s1360 = ssub.s32 2048, 2048
      %1361 = vsyncadd [#allocation4], %s1360
      %s1362 = sshll.u32 [#allocation8], 4
      %s1363 = int_to_ptr.vmem [resolvable:$true] %s1362
      %1368 = dma.vmem_to_hbm [thread:$0]  %s1363, 2048, %s3, [#allocation4], 128, 128, 8
    $region29: #{tpu_custom_call.1} parent=1 // pred_fallthru
      _
    // Predicated region
    $region30: #{tpu_custom_call.1} parent=1 // pred_check
      _
    $region31: #{tpu_custom_call.1} parent=1 // pred_check_branch
      %1370 = sbr.rel (0) target = $region33
    $region32: #{tpu_custom_call.1} parent=1 // pred_region
      %1371 = dma.done [#allocation4], 2048
    $region33: #{tpu_custom_call.1} parent=1 // pred_fallthru
      _
    %1372 = vsyncpa [#allocation3], 1
    %1373 = vsyncpa [#allocation6], 1
    %1374 = vsyncpa [#allocation4], 1

</llo_original>
